<compile_context>
chip_gen: v6e
topology: v6e:2x2x1
jax: 0.10.0
libtpu: 0.0.40
codegen_flags: <defaults>
</compile_context>

<pallas_src>
import jax
import jax.numpy as jnp
from jax.experimental import pallas as pl
from jax.experimental.pallas import tpu as pltpu

LANE = 128  # TPU lane width: pad feature dims to multiples of this


def _round_up(x, m):
    return (x + m - 1) // m * m


def _mlp_kernel(x_ref, w1_ref, b1_ref, w2_ref, b2_ref, o_ref):
    # fc1: x @ W1 + b1, ReLU  (MXU matmul, VPU elementwise, all lane-dense)
    x = x_ref[...]
    h = jnp.dot(x, w1_ref[...], preferred_element_type=jnp.float32)
    h = jnp.maximum(h + b1_ref[...], 0.0)          # bias (1, Hp) broadcasts over batch
    # fc2: h @ W2 + b2
    q = jnp.dot(h.astype(w2_ref.dtype), w2_ref[...],
                preferred_element_type=jnp.float32)
    o_ref[...] = (q + b2_ref[...]).astype(o_ref.dtype)


@jax.jit
def network_forward(state, w1, b1, w2, b2):
    """q = fc2(relu(fc1(state))) — same semantics as Network.forward.

    state: (batch, input_size) f32
    w1:    (input_size, hidden)  b1: (hidden,)
    w2:    (hidden, nb_action)   b2: (nb_action,)
    """
    batch, input_size = state.shape
    hidden = w1.shape[1]
    nb_action = w2.shape[1]

    # ---- pad feature dims to lane-dense widths (zeros are inert) ----------
    h_pad = _round_up(hidden, LANE)
    a_pad = _round_up(nb_action, LANE)
    w1p = jnp.pad(w1, ((0, 0), (0, h_pad - hidden)))
    b1p = jnp.pad(b1.reshape(1, -1), ((0, 0), (0, h_pad - hidden)))
    w2p = jnp.pad(w2, ((0, h_pad - hidden), (0, a_pad - nb_action)))
    b2p = jnp.pad(b2.reshape(1, -1), ((0, 0), (0, a_pad - nb_action)))

    # ---- tile the batch; pick the largest comfortable tile (<=1024 rows) --
    tm = min(_round_up(batch, 8), 1024)
    batch_padded = _round_up(batch, tm)
    if batch_padded != batch:
        state = jnp.pad(state, ((0, batch_padded - batch), (0, 0)))
    grid = (batch_padded // tm,)

    out = pl.pallas_call(
        _mlp_kernel,
        out_shape=jax.ShapeDtypeStruct((batch_padded, a_pad), jnp.float32),
        grid_spec=pltpu.PrefetchScalarGridSpec(
            num_scalar_prefetch=0,
            grid=grid,
            in_specs=[
                # batch-tiled activations
                pl.BlockSpec((tm, input_size), lambda i: (i, 0)),
                # weights/biases: constant index_map -> DMA'd once, VMEM-resident
                pl.BlockSpec((input_size, h_pad), lambda i: (0, 0)),
                pl.BlockSpec((1, h_pad), lambda i: (0, 0)),
                pl.BlockSpec((h_pad, a_pad), lambda i: (0, 0)),
                pl.BlockSpec((1, a_pad), lambda i: (0, 0)),
            ],
            out_specs=pl.BlockSpec((tm, a_pad), lambda i: (i, 0)),
        ),
        compiler_params=pltpu.CompilerParams(
            dimension_semantics=("parallel",)),
    )(state, w1p, b1p, w2p, b2p)

    # slice off padded batch rows and padded output lanes
    return out[:batch, :nb_action]


def init_network_params(key, input_size, nb_action, hidden=30,
                        dtype=jnp.float32):
    """Deterministic init mimicking nn.Linear defaults:
    U(-1/sqrt(fan_in), +1/sqrt(fan_in)).  Weights are stored transposed
    relative to PyTorch: (in, out)."""
    k1, k2, k3, k4 = jax.random.split(key, 4)
    bound1 = 1.0 / jnp.sqrt(jnp.asarray(input_size, dtype))
    bound2 = 1.0 / jnp.sqrt(jnp.asarray(hidden, dtype))
    w1 = jax.random.uniform(k1, (input_size, hidden), dtype, -bound1, bound1)
    b1 = jax.random.uniform(k2, (hidden,), dtype, -bound1, bound1)
    w2 = jax.random.uniform(k3, (hidden, nb_action), dtype, -bound2, bound2)
    b2 = jax.random.uniform(k4, (nb_action,), dtype, -bound2, bound2)
    return w1, b1, w2, b2


if __name__ == "__main__":
    key = jax.random.PRNGKey(0)
    kp, kx = jax.random.split(key)

    input_size = 16    # state dimensionality
    nb_action = 4      # Q-values per state

    w1, b1, w2, b2 = init_network_params(kp, input_size, nb_action)

    # check both an aligned batch and a ragged one (exercises batch padding)
    for batch in (8, 5):
        state = jax.random.normal(jax.random.fold_in(kx, batch),
                                  (batch, input_size), jnp.float32)
        q_values = network_forward(state, w1, b1, w2, b2)
        jax.block_until_ready(q_values)

        # reference in plain JAX (same semantics as the PyTorch module)
        ref = jnp.maximum(state @ w1 + b1, 0.0) @ w2 + b2
        assert q_values.shape == (batch, nb_action)
        assert jnp.allclose(q_values, ref, atol=1e-5, rtol=1e-5)

    print("KERNEL_OK")
</pallas_src>

<mosaic_0001>
module attributes {stable_mosaic.version = 11 : i64} {
  func.func @_mlp_kernel(%arg0: i32, %arg1: memref<8x16xf32, #tpu.memory_space<vmem>>, %arg2: memref<16x128xf32, #tpu.memory_space<vmem>>, %arg3: memref<1x128xf32, #tpu.memory_space<vmem>>, %arg4: memref<128x128xf32, #tpu.memory_space<vmem>>, %arg5: memref<1x128xf32, #tpu.memory_space<vmem>>, %arg6: memref<8x128xf32, #tpu.memory_space<vmem>>) attributes {dimension_semantics = [#tpu.dimension_semantics<parallel>], iteration_bounds = array<i64: 1>, scalar_prefetch = 0 : i64, scratch_operands = 0 : i64, tpu.core_type = #tpu.core_type<tc>, window_params = [{transform_indices = @transform_0, window_bounds = array<i64: 8, 16>}, {pipeline_mode = #tpu.pipeline_mode<synchronous>, transform_indices = @transform_1, window_bounds = array<i64: 16, 128>}, {pipeline_mode = #tpu.pipeline_mode<synchronous>, transform_indices = @transform_2, window_bounds = array<i64: 1, 128>}, {pipeline_mode = #tpu.pipeline_mode<synchronous>, transform_indices = @transform_3, window_bounds = array<i64: 128, 128>}, {pipeline_mode = #tpu.pipeline_mode<synchronous>, transform_indices = @transform_4, window_bounds = array<i64: 1, 128>}, {transform_indices = @transform_5, window_bounds = array<i64: 8, 128>}]} {
    %c0 = arith.constant 0 : index
    %c0_0 = arith.constant 0 : index
    %0 = vector.load %arg1[%c0, %c0_0] : memref<8x16xf32, #tpu.memory_space<vmem>>, vector<8x16xf32>
    %c0_1 = arith.constant 0 : index
    %c0_2 = arith.constant 0 : index
    %1 = vector.load %arg2[%c0_1, %c0_2] : memref<16x128xf32, #tpu.memory_space<vmem>>, vector<16x128xf32>
    %cst = arith.constant dense<0.000000e+00> : vector<8x128xf32>
    %2 = tpu.matmul %0, %1, %cst {dimension_numbers = #tpu.dot_dimension_numbers<[1], [0], [0], [1], [0, 0, 1, 1], [], []>} : vector<8x16xf32>, vector<16x128xf32>, vector<8x128xf32> -> vector<8x128xf32>
    %c0_3 = arith.constant 0 : index
    %c0_4 = arith.constant 0 : index
    %3 = vector.load %arg3[%c0_3, %c0_4] : memref<1x128xf32, #tpu.memory_space<vmem>>, vector<1x128xf32>
    %4 = vector.broadcast %3 : vector<1x128xf32> to vector<8x128xf32>
    %5 = arith.addf %2, %4 : vector<8x128xf32>
    %cst_5 = arith.constant 0.000000e+00 : f32
    %6 = vector.broadcast %cst_5 : f32 to vector<8x128xf32>
    %7 = arith.maximumf %5, %6 : vector<8x128xf32>
    %c0_6 = arith.constant 0 : index
    %c0_7 = arith.constant 0 : index
    %8 = vector.load %arg4[%c0_6, %c0_7] : memref<128x128xf32, #tpu.memory_space<vmem>>, vector<128x128xf32>
    %cst_8 = arith.constant dense<0.000000e+00> : vector<8x128xf32>
    %9 = tpu.matmul %7, %8, %cst_8 {dimension_numbers = #tpu.dot_dimension_numbers<[1], [0], [0], [1], [0, 0, 1, 1], [], []>} : vector<8x128xf32>, vector<128x128xf32>, vector<8x128xf32> -> vector<8x128xf32>
    %c0_9 = arith.constant 0 : index
    %c0_10 = arith.constant 0 : index
    %10 = vector.load %arg5[%c0_9, %c0_10] : memref<1x128xf32, #tpu.memory_space<vmem>>, vector<1x128xf32>
    %11 = vector.broadcast %10 : vector<1x128xf32> to vector<8x128xf32>
    %12 = arith.addf %9, %11 : vector<8x128xf32>
    %c0_11 = arith.constant 0 : index
    %c0_12 = arith.constant 0 : index
    %13 = vector.load %arg6[%c0_11, %c0_12] : memref<8x128xf32, #tpu.memory_space<vmem>>, vector<8x128xf32>
    tpu.vector_store %arg6[%c0_11, %c0_12], %12 {strides = array<i32>} : memref<8x128xf32, #tpu.memory_space<vmem>>, vector<8x128xf32>,
    return
  }
  func.func @transform_0(%arg0: i32) -> (i32, i32) {
    %c0_i32 = arith.constant 0 : i32
    %c0_i32_0 = arith.constant 0 : i32
    return %arg0, %c0_i32 : i32, i32
  }
  func.func @transform_1(%arg0: i32) -> (i32, i32) {
    %c0_i32 = arith.constant 0 : i32
    %c0_i32_0 = arith.constant 0 : i32
    %c0_i32_1 = arith.constant 0 : i32
    return %c0_i32, %c0_i32_0 : i32, i32
  }
  func.func @transform_2(%arg0: i32) -> (i32, i32) {
    %c0_i32 = arith.constant 0 : i32
    %c0_i32_0 = arith.constant 0 : i32
    %c0_i32_1 = arith.constant 0 : i32
    return %c0_i32, %c0_i32_0 : i32, i32
  }
  func.func @transform_3(%arg0: i32) -> (i32, i32) {
    %c0_i32 = arith.constant 0 : i32
    %c0_i32_0 = arith.constant 0 : i32
    %c0_i32_1 = arith.constant 0 : i32
    return %c0_i32, %c0_i32_0 : i32, i32
  }
  func.func @transform_4(%arg0: i32) -> (i32, i32) {
    %c0_i32 = arith.constant 0 : i32
    %c0_i32_0 = arith.constant 0 : i32
    %c0_i32_1 = arith.constant 0 : i32
    return %c0_i32, %c0_i32_0 : i32, i32
  }
  func.func @transform_5(%arg0: i32) -> (i32, i32) {
    %c0_i32 = arith.constant 0 : i32
    %c0_i32_0 = arith.constant 0 : i32
    return %arg0, %c0_i32 : i32, i32
  }
}

</mosaic_0001>

<llo_original>
// kernel: network_forward.1
$region0: #{network_forward.1}
  #allocation0 [shape = 'u32[]', space=smem, size = 0x4, offset = 0x4, fixed_abs, tag = 'smem constant byte address 0x4 - core index']
  #allocation1 [shape = 'u32[144,128]{1,0:T(1,128)}', space=vmem, size = 0x12000, scoped, tag = 'internal scratch']
  %s0 = inlined_call_operand.vmem [shape: f32[8,16], index: 0, kind: input, shape index: {}]
  %s1 = inlined_call_operand.vmem [shape: f32[16,128], index: 1, kind: input, shape index: {}]
  %s2 = inlined_call_operand.vmem [shape: f32[1,128], index: 2, kind: input, shape index: {}]
  %s3 = inlined_call_operand.vmem [shape: f32[128,128], index: 3, kind: input, shape index: {}]
  %s4 = inlined_call_operand.vmem [shape: f32[1,128], index: 4, kind: input, shape index: {}]
  %s5 = inlined_call_operand.vmem [shape: f32[8,128], index: 5, kind: output, shape index: {}]
  %s6 = sld [smem:[#allocation0]]
  $region30: #{network_forward.1} parent=0
    _
  %s8 = ssub.s32 1, %s6
  %s9 = scalar_select 0, %s8, %s6
  // Predicated region
  $region2: #{network_forward.1} parent=0 // pred_check
    _
  $region3: #{network_forward.1} parent=0 // pred_check_branch
    %11 = sbr.rel (0) target = $region5
  $region4: #{network_forward.1} parent=0 // pred_region
    _
  $region5: #{network_forward.1} parent=0 // pred_fallthru
    _
  // Predicated region
  $region6: #{network_forward.1} parent=0 // pred_check
    _
  $region7: #{network_forward.1} parent=0 // pred_check_branch
    %13 = sbr.rel (0) target = $region9
  $region8: #{network_forward.1} parent=0 // pred_region
    _
  $region9: #{network_forward.1} parent=0 // pred_fallthru
    _
  // Predicated region
  $region10: #{network_forward.1} parent=0 // pred_check
    _
  $region11: #{network_forward.1} parent=0 // pred_check_branch
    %15 = sbr.rel (0) target = $region13
  $region12: #{network_forward.1} parent=0 // pred_region
    _
  $region13: #{network_forward.1} parent=0 // pred_fallthru
    _
  // Predicated region
  $region14: #{network_forward.1} parent=0 // pred_check
    _
  $region15: #{network_forward.1} parent=0 // pred_check_branch
    %17 = sbr.rel (0) target = $region17
  $region16: #{network_forward.1} parent=0 // pred_region
    _
  $region17: #{network_forward.1} parent=0 // pred_fallthru
    _
  // Predicated region
  $region18: #{network_forward.1} parent=0 // pred_check
    _
  $region19: #{network_forward.1} parent=0 // pred_check_branch
    %19 = sbr.rel (0) target = $region21
  $region20: #{network_forward.1} parent=0 // pred_region
    _
  $region21: #{network_forward.1} parent=0 // pred_fallthru
    _
  %v20 = vld [vmem:[%s0] sm:$0xff]
  %v21 = vld [vmem:[%s1] sm:$0xff]
  %v22 = vld [vmem:[%s1 + $0x8] sm:$0xff]
  %v23 = vld [vmem:[%s2] sm:$0x1]
  %v25 = vlaneseq
  %v26 = vshrl.u32 %v25, 7
  %v27 = vsub.s32 0, %v26
  %v28 = vrot.slane %v23, %v27
  %vm30 = vcmask 130048
  %v32 = vsel %vm30, %v20, 0
  %34 = vmatprep.subr.mxu0 0.0
  %35 = vmatpush1.msra.mxu0 0.0
  %36 = vmatprep.subr.mxu0 0.0
  %37 = vmatpush1.msra.mxu0 0.0
  %38 = vmatprep.subr.mxu0 0.0
  %39 = vmatpush1.msra.mxu0 0.0
  %40 = vmatprep.subr.mxu0 0.0
  %41 = vmatpush1.msra.mxu0 0.0
  %42 = vmatprep.subr.mxu0 0.0
  %43 = vmatpush1.msra.mxu0 0.0
  %44 = vmatprep.subr.mxu0 0.0
  %45 = vmatpush1.msra.mxu0 0.0
  %46 = vmatprep.subr.mxu0 0.0
  %47 = vmatpush1.msra.mxu0 0.0
  %48 = vmatprep.subr.mxu0 0.0
  %49 = vmatpush1.msra.mxu0 0.0
  %50 = vmatprep.subr.mxu0 0.0
  %51 = vmatpush1.msra.mxu0 0.0
  %52 = vmatprep.subr.mxu0 0.0
  %53 = vmatpush1.msra.mxu0 0.0
  %54 = vmatprep.subr.mxu0 0.0
  %55 = vmatpush1.msra.mxu0 0.0
  %56 = vmatprep.subr.mxu0 0.0
  %57 = vmatpush1.msra.mxu0 0.0
  %58 = vmatprep.subr.mxu0 0.0
  %59 = vmatpush1.msra.mxu0 0.0
  %60 = vmatprep.subr.mxu0 0.0
  %61 = vmatpush1.msra.mxu0 0.0
  %62 = vmatprep.subr.mxu0 0.0
  %63 = vmatpush1.msra.mxu0 %v22
  %64 = vmatprep.subr.mxu0 0.0
  %65 = vmatpush1.msra.mxu0 %v21
  %66 = vmatprep.subr.mxu0 0.0
  %67 = vmatpush2.msra.mxu0 0.0
  %68 = vmatprep.subr.mxu0 0.0
  %69 = vmatpush2.msra.mxu0 0.0
  %70 = vmatprep.subr.mxu0 0.0
  %71 = vmatpush2.msra.mxu0 0.0
  %72 = vmatprep.subr.mxu0 0.0
  %73 = vmatpush2.msra.mxu0 0.0
  %74 = vmatprep.subr.mxu0 0.0
  %75 = vmatpush2.msra.mxu0 0.0
  %76 = vmatprep.subr.mxu0 0.0
  %77 = vmatpush2.msra.mxu0 0.0
  %78 = vmatprep.subr.mxu0 0.0
  %79 = vmatpush2.msra.mxu0 0.0
  %80 = vmatprep.subr.mxu0 0.0
  %81 = vmatpush2.msra.mxu0 0.0
  %82 = vmatprep.subr.mxu0 0.0
  %83 = vmatpush2.msra.mxu0 0.0
  %84 = vmatprep.subr.mxu0 0.0
  %85 = vmatpush2.msra.mxu0 0.0
  %86 = vmatprep.subr.mxu0 0.0
  %87 = vmatpush2.msra.mxu0 0.0
  %88 = vmatprep.subr.mxu0 0.0
  %89 = vmatpush2.msra.mxu0 0.0
  %90 = vmatprep.subr.mxu0 0.0
  %91 = vmatpush2.msra.mxu0 0.0
  %92 = vmatprep.subr.mxu0 0.0
  %93 = vmatpush2.msra.mxu0 0.0
  %94 = vmatprep.subr.mxu0 0.0
  %95 = vmatpush2.msra.mxu0 0.0
  %96 = vmatprep.subr.mxu0 0.0
  %97 = vmatpush2.msra.mxu0 0.0
  %98 = vmatprep.mubr.f32.mxu0 0.0
  %99 = vmatmul.mubr.f32.gmra.mxu0 %v32
  %v100 = vpop.f32.mrf.mxu0
  %v101 = vadd.f32 %v28, %v100
  %v102 = vpop.f32.mrf.mxu0
  %103 = vdwg.mxu0
  %v104 = vmax.f32 %v101, 0.0
  %v105 = vld [vmem:[%s3] sm:$0xff]
  %v106 = vld [vmem:[%s3 + $0x8] sm:$0xff]
  %v107 = vld [vmem:[%s3 + $0x10] sm:$0xff]
  %v108 = vld [vmem:[%s3 + $0x18] sm:$0xff]
  %v109 = vld [vmem:[%s3 + $0x20] sm:$0xff]
  %v110 = vld [vmem:[%s3 + $0x28] sm:$0xff]
  %v111 = vld [vmem:[%s3 + $0x30] sm:$0xff]
  %v112 = vld [vmem:[%s3 + $0x38] sm:$0xff]
  %v113 = vld [vmem:[%s3 + $0x40] sm:$0xff]
  %v114 = vld [vmem:[%s3 + $0x48] sm:$0xff]
  %v115 = vld [vmem:[%s3 + $0x50] sm:$0xff]
  %v116 = vld [vmem:[%s3 + $0x58] sm:$0xff]
  %v117 = vld [vmem:[%s3 + $0x60] sm:$0xff]
  %v118 = vld [vmem:[%s3 + $0x68] sm:$0xff]
  %v119 = vld [vmem:[%s3 + $0x70] sm:$0xff]
  %v120 = vld [vmem:[%s3 + $0x78] sm:$0xff]
  %v121 = vld [vmem:[%s4] sm:$0x1]
  %v123 = vlaneseq
  %v124 = vshrl.u32 %v123, 7
  %v125 = vsub.s32 0, %v124
  %v126 = vrot.slane %v121, %v125
  %128 = vmatprep.subr.mxu0 0.0
  %129 = vmatpush1.msra.mxu0 %v120
  %130 = vmatprep.subr.mxu0 0.0
  %131 = vmatpush1.msra.mxu0 %v119
  %132 = vmatprep.subr.mxu0 0.0
  %133 = vmatpush1.msra.mxu0 %v118
  %134 = vmatprep.subr.mxu0 0.0
  %135 = vmatpush1.msra.mxu0 %v117
  %136 = vmatprep.subr.mxu0 0.0
  %137 = vmatpush1.msra.mxu0 %v116
  %138 = vmatprep.subr.mxu0 0.0
  %139 = vmatpush1.msra.mxu0 %v115
  %140 = vmatprep.subr.mxu0 0.0
  %141 = vmatpush1.msra.mxu0 %v114
  %142 = vmatprep.subr.mxu0 0.0
  %143 = vmatpush1.msra.mxu0 %v113
  %144 = vmatprep.subr.mxu0 0.0
  %145 = vmatpush1.msra.mxu0 %v112
  %146 = vmatprep.subr.mxu0 0.0
  %147 = vmatpush1.msra.mxu0 %v111
  %148 = vmatprep.subr.mxu0 0.0
  %149 = vmatpush1.msra.mxu0 %v110
  %150 = vmatprep.subr.mxu0 0.0
  %151 = vmatpush1.msra.mxu0 %v109
  %152 = vmatprep.subr.mxu0 0.0
  %153 = vmatpush1.msra.mxu0 %v108
  %154 = vmatprep.subr.mxu0 0.0
  %155 = vmatpush1.msra.mxu0 %v107
  %156 = vmatprep.subr.mxu0 0.0
  %157 = vmatpush1.msra.mxu0 %v106
  %158 = vmatprep.subr.mxu0 0.0
  %159 = vmatpush1.msra.mxu0 %v105
  %160 = vmatprep.subr.mxu0 0.0
  %161 = vmatpush2.msra.mxu0 0.0
  %162 = vmatprep.subr.mxu0 0.0
  %163 = vmatpush2.msra.mxu0 0.0
  %164 = vmatprep.subr.mxu0 0.0
  %165 = vmatpush2.msra.mxu0 0.0
  %166 = vmatprep.subr.mxu0 0.0
  %167 = vmatpush2.msra.mxu0 0.0
  %168 = vmatprep.subr.mxu0 0.0
  %169 = vmatpush2.msra.mxu0 0.0
  %170 = vmatprep.subr.mxu0 0.0
  %171 = vmatpush2.msra.mxu0 0.0
  %172 = vmatprep.subr.mxu0 0.0
  %173 = vmatpush2.msra.mxu0 0.0
  %174 = vmatprep.subr.mxu0 0.0
  %175 = vmatpush2.msra.mxu0 0.0
  %176 = vmatprep.subr.mxu0 0.0
  %177 = vmatpush2.msra.mxu0 0.0
  %178 = vmatprep.subr.mxu0 0.0
  %179 = vmatpush2.msra.mxu0 0.0
  %180 = vmatprep.subr.mxu0 0.0
  %181 = vmatpush2.msra.mxu0 0.0
  %182 = vmatprep.subr.mxu0 0.0
  %183 = vmatpush2.msra.mxu0 0.0
  %184 = vmatprep.subr.mxu0 0.0
  %185 = vmatpush2.msra.mxu0 0.0
  %186 = vmatprep.subr.mxu0 0.0
  %187 = vmatpush2.msra.mxu0 0.0
  %188 = vmatprep.subr.mxu0 0.0
  %189 = vmatpush2.msra.mxu0 0.0
  %190 = vmatprep.subr.mxu0 0.0
  %191 = vmatpush2.msra.mxu0 0.0
  %192 = vmatprep.mubr.f32.mxu0 0.0
  %193 = vmatmul.mubr.f32.gmra.mxu0 %v104
  %v194 = vpop.f32.mrf.mxu0
  %v195 = vadd.f32 %v126, %v194
  %v196 = vpop.f32.mrf.mxu0
  %197 = vdwg.mxu0
  %198 = vst [vmem:[%s5] sm:$0xff] %v195
  // Predicated region
  $region22: #{network_forward.1} parent=0 // pred_check
    _
  $region23: #{network_forward.1} parent=0 // pred_check_branch
    %200 = sbr.rel (0) target = $region25
  $region24: #{network_forward.1} parent=0 // pred_region
    _
  $region25: #{network_forward.1} parent=0 // pred_fallthru
    _
  // Predicated region
  $region26: #{network_forward.1} parent=0 // pred_check
    _
  $region27: #{network_forward.1} parent=0 // pred_check_branch
    %202 = sbr.rel (0) target = $region29
  $region28: #{network_forward.1} parent=0 // pred_region
    _
  $region29: #{network_forward.1} parent=0 // pred_fallthru
    _

</llo_original>
